<compile_context>
chip_gen: v7x
topology: tpu7x:2x2x1
jax: 0.10.0
libtpu: 0.0.40
codegen_flags: <defaults>
</compile_context>

<pallas_src>
import math
import functools

import jax
import jax.numpy as jnp
from jax.experimental import pallas as pl
from jax.experimental.pallas import tpu as pltpu


def _attn_kernel(x_ref, wqkv_ref, bqkv_ref, wp_ref, bp_ref, mask_ref, o_ref,
                 *, n_head: int, hd: int):
    """One grid step = one batch element, all heads at once.

    x_ref    : (1, T, C)          bf16  activations for this batch element
    wqkv_ref : (n_head, C, 3*hd)  bf16  per-head [Wq|Wk|Wv] column blocks
                                        (1/sqrt(hd) pre-folded into Q columns)
    bqkv_ref : (n_head, 1, 3*hd)  f32   per-head fused QKV bias (Q pre-scaled)
    wp_ref   : (n_head, hd, C)    bf16  per-head output-projection row blocks
    bp_ref   : (1, C)             f32   output-projection bias
    mask_ref : (T, T)             f32   additive causal mask (0 / -1e30)
    o_ref    : (1, T, C)          f32   output for this batch element
    """
    bf16, f32 = jnp.bfloat16, jnp.float32
    T, C = x_ref.shape[1], x_ref.shape[2]

    x = x_ref[0]                                             # (T, C) bf16
    xh = jnp.broadcast_to(x[None], (n_head, T, C))           # heads = batch dim

    # Fused per-head QKV projection: batched MXU matmul, f32 accumulation.
    qkv = jnp.einsum("htc,hcd->htd", xh, wqkv_ref[...],
                     preferred_element_type=f32) + bqkv_ref[...]   # (H, T, 3hd)
    q = qkv[..., 0 * hd:1 * hd]
    k = qkv[..., 1 * hd:2 * hd]
    v = qkv[..., 2 * hd:3 * hd]

    # Scores (scale already folded into Q) + resident additive causal mask.
    att = jnp.einsum("hqd,hkd->hqk", q.astype(bf16), k.astype(bf16),
                     preferred_element_type=f32)                    # (H, T, T)
    att = att + mask_ref[...][None]

    # Numerically-stable softmax over keys; f32 stats, EUP reciprocal.
    att = att - jnp.max(att, axis=-1, keepdims=True)
    p = jnp.exp(att)
    p = p * pl.reciprocal(jnp.sum(p, axis=-1, keepdims=True), approx=True)

    # P @ V, then per-head output-projection partials reduced locally (f32).
    y = jnp.einsum("hqk,hkd->hqd", p.astype(bf16), v.astype(bf16),
                   preferred_element_type=f32)                      # (H, T, hd)
    yh = jnp.einsum("hqd,hdc->hqc", y.astype(bf16), wp_ref[...],
                    preferred_element_type=f32)                     # (H, T, C)
    out = jnp.sum(yh, axis=0) + bp_ref[...]                         # (T, C) f32

    o_ref[0] = out.astype(o_ref.dtype)   # single store per step (no RMW chain)


def pack_params(params, n_head):
    """One-time weight repack (call at weight-load time, NOT per forward).

    Builds per-head fused QKV column blocks with the 1/sqrt(hd) score scale
    folded into the Q columns / Q bias, per-head output-projection row blocks,
    and casts matmul operands to bf16.
    """
    C = params["wq"].shape[0]
    assert C % n_head == 0
    hd = C // n_head
    scale = 1.0 / math.sqrt(hd)
    bf16, f32 = jnp.bfloat16, jnp.float32

    def head_cols(w):                        # (C, C) -> (n_head, C, hd)
        return jnp.transpose(w.reshape(C, n_head, hd), (1, 0, 2))

    def head_bias(b):                        # (1, C) -> (n_head, 1, hd)
        return jnp.transpose(b.reshape(1, n_head, hd), (1, 0, 2))

    w_qkv = jnp.concatenate(
        [head_cols(params["wq"]) * scale,    # fold 1/sqrt(hd) into Q columns
         head_cols(params["wk"]),
         head_cols(params["wv"])], axis=-1).astype(bf16)      # (H, C, 3*hd)
    b_qkv = jnp.concatenate(
        [head_bias(params["bq"]) * scale,
         head_bias(params["bk"]),
         head_bias(params["bv"])], axis=-1).astype(f32)       # (H, 1, 3*hd)
    w_proj = params["wp"].reshape(n_head, hd, C).astype(bf16)     # (H, hd, C)
    b_proj = params["bp"].astype(f32)                             # (1, C)
    return dict(w_qkv=w_qkv, b_qkv=b_qkv, w_proj=w_proj, b_proj=b_proj)


@functools.partial(jax.jit, static_argnames=("n_head",))
def causal_self_attention(x, packed, *, n_head):
    """x: (B, T, C) float32.  packed: output of pack_params (arrays only)."""
    B, T, C = x.shape
    assert C % n_head == 0
    hd = C // n_head

    # Additive causal mask (compile-time constant under jit for static T);
    # resident in VMEM via a constant index_map — built once, not per step.
    mask_bias = jnp.where(jnp.tril(jnp.ones((T, T), jnp.bool_)),
                          0.0, -1e30).astype(jnp.float32)

    kernel = functools.partial(_attn_kernel, n_head=n_head, hd=hd)

    return pl.pallas_call(
        kernel,
        out_shape=jax.ShapeDtypeStruct((B, T, C), jnp.float32),
        grid_spec=pltpu.PrefetchScalarGridSpec(
            num_scalar_prefetch=0,
            grid=(B,),
            in_specs=[
                pl.BlockSpec((1, T, C), lambda b: (b, 0, 0)),            # x
                pl.BlockSpec((n_head, C, 3 * hd), lambda b: (0, 0, 0)),  # W_qkv (resident)
                pl.BlockSpec((n_head, 1, 3 * hd), lambda b: (0, 0, 0)),  # b_qkv (resident)
                pl.BlockSpec((n_head, hd, C), lambda b: (0, 0, 0)),      # W_proj (resident)
                pl.BlockSpec((1, C), lambda b: (0, 0)),                  # b_proj (resident)
                pl.BlockSpec((T, T), lambda b: (0, 0)),                  # causal mask (resident)
            ],
            out_specs=pl.BlockSpec((1, T, C), lambda b: (b, 0, 0)),
        ),
        compiler_params=pltpu.CompilerParams(
            dimension_semantics=("parallel",)),   # batch axis: megacore on v7x
    )(x.astype(jnp.bfloat16), packed["w_qkv"], packed["b_qkv"],
      packed["w_proj"], packed["b_proj"], mask_bias)


def _init_linear(key, fan_in, fan_out):
    """PyTorch nn.Linear-style uniform init, weight stored as (in, out)."""
    kw, kb = jax.random.split(key)
    bound = 1.0 / math.sqrt(fan_in)
    w = jax.random.uniform(kw, (fan_in, fan_out), jnp.float32, -bound, bound)
    b = jax.random.uniform(kb, (1, fan_out), jnp.float32, -bound, bound)
    return w, b


def _reference(x, params, n_head, cast_dtype=jnp.float32, fold_scale=False):
    """Pure-JAX reference. With cast_dtype=bfloat16 and fold_scale=True it
    mirrors the kernel's bf16-input / f32-accumulate / scale-folded arithmetic
    for a tight comparison; with f32 it is the module's full-precision math."""
    B, T, C = x.shape
    hd = C // n_head
    f32 = jnp.float32
    scale = 1.0 / math.sqrt(hd)
    c = lambda a: a.astype(cast_dtype)

    wq = params["wq"] * scale if fold_scale else params["wq"]
    bq = params["bq"] * scale if fold_scale else params["bq"]

    q = jnp.einsum("btc,cd->btd", c(x), c(wq), preferred_element_type=f32) + bq[0]
    k = jnp.einsum("btc,cd->btd", c(x), c(params["wk"]),
                   preferred_element_type=f32) + params["bk"][0]
    v = jnp.einsum("btc,cd->btd", c(x), c(params["wv"]),
                   preferred_element_type=f32) + params["bv"][0]

    q = q.reshape(B, T, n_head, hd).transpose(0, 2, 1, 3)
    k = k.reshape(B, T, n_head, hd).transpose(0, 2, 1, 3)
    v = v.reshape(B, T, n_head, hd).transpose(0, 2, 1, 3)

    att = jnp.einsum("bhqd,bhkd->bhqk", c(q), c(k), preferred_element_type=f32)
    if not fold_scale:
        att = att * scale
    mask = jnp.tril(jnp.ones((T, T), bool))
    att = jnp.where(mask[None, None], att, -jnp.inf)
    att = jax.nn.softmax(att, axis=-1)

    y = jnp.einsum("bhqk,bhkd->bhqd", c(att), c(v), preferred_element_type=f32)
    y = y.transpose(0, 2, 1, 3).reshape(B, T, C)
    return jnp.einsum("btc,cd->btd", c(y), c(params["wp"]),
                      preferred_element_type=f32) + params["bp"][0]


if __name__ == "__main__":
    # demo config: n_embd=32, n_head=4, block_size >= T
    B, T, C, n_head = 2, 8, 32, 4

    key = jax.random.PRNGKey(0)
    kx, kq, kk, kv, kp = jax.random.split(key, 5)

    x = jax.random.normal(kx, (B, T, C), jnp.float32)

    wq, bq = _init_linear(kq, C, C)
    wk, bk = _init_linear(kk, C, C)
    wv, bv = _init_linear(kv, C, C)
    wp, bp = _init_linear(kp, C, C)
    params = dict(wq=wq, bq=bq, wk=wk, bk=bk, wv=wv, bv=bv, wp=wp, bp=bp)

    # One-time repack at "weight-load time" — not part of the per-call path.
    packed = pack_params(params, n_head)

    out = causal_self_attention(x, packed, n_head=n_head)
    out = jax.block_until_ready(out)
    assert out.shape == (B, T, C)

    # Tight check vs a reference mirroring the kernel's bf16 / scale-folded
    # arithmetic (validates masking, softmax, head assembly, projection).
    ref_bf16 = _reference(x, params, n_head, cast_dtype=jnp.bfloat16,
                          fold_scale=True)
    assert jnp.allclose(out, ref_bf16, atol=2e-2, rtol=2e-2), \
        "mismatch vs bf16 reference"

    # Loose check vs full-f32 module semantics (bf16 quantization only).
    ref_f32 = _reference(x, params, n_head, cast_dtype=jnp.float32)
    assert jnp.allclose(out, ref_f32, atol=1e-1, rtol=1e-1), \
        "mismatch vs f32 reference"

    print("KERNEL_OK")
</pallas_src>

<mosaic_0001>
module attributes {stable_mosaic.version = 11 : i64} {
  func.func @_attn_kernel(%arg0: i32, %arg1: memref<1x8x32xbf16, #tpu.memory_space<vmem>>, %arg2: memref<4x32x24xbf16, #tpu.memory_space<vmem>>, %arg3: memref<4x1x24xf32, #tpu.memory_space<vmem>>, %arg4: memref<4x8x32xbf16, #tpu.memory_space<vmem>>, %arg5: memref<1x32xf32, #tpu.memory_space<vmem>>, %arg6: memref<8x8xf32, #tpu.memory_space<vmem>>, %arg7: memref<1x8x32xf32, #tpu.memory_space<vmem>>) attributes {dimension_semantics = [#tpu.dimension_semantics<parallel>], iteration_bounds = array<i64: 2>, scalar_prefetch = 0 : i64, scratch_operands = 0 : i64, tpu.core_type = #tpu.core_type<tc>, window_params = [{transform_indices = @transform_0, window_bounds = array<i64: 1, 8, 32>}, {pipeline_mode = #tpu.pipeline_mode<synchronous>, transform_indices = @transform_1, window_bounds = array<i64: 4, 32, 24>}, {pipeline_mode = #tpu.pipeline_mode<synchronous>, transform_indices = @transform_2, window_bounds = array<i64: 4, 1, 24>}, {pipeline_mode = #tpu.pipeline_mode<synchronous>, transform_indices = @transform_3, window_bounds = array<i64: 4, 8, 32>}, {pipeline_mode = #tpu.pipeline_mode<synchronous>, transform_indices = @transform_4, window_bounds = array<i64: 1, 32>}, {pipeline_mode = #tpu.pipeline_mode<synchronous>, transform_indices = @transform_5, window_bounds = array<i64: 8, 8>}, {transform_indices = @transform_6, window_bounds = array<i64: 1, 8, 32>}]} {
    %c0 = arith.constant 0 : index
    %c0_0 = arith.constant 0 : index
    %c0_1 = arith.constant 0 : index
    %0 = vector.load %arg1[%c0, %c0_0, %c0_1] : memref<1x8x32xbf16, #tpu.memory_space<vmem>>, vector<1x8x32xbf16>
    %1 = vector.shape_cast %0 : vector<1x8x32xbf16> to vector<8x32xbf16>
    %2 = vector.shape_cast %1 : vector<8x32xbf16> to vector<1x8x32xbf16>
    %3 = vector.shape_cast %2 : vector<1x8x32xbf16> to vector<1x8x32xbf16>
    %4 = vector.broadcast %3 : vector<1x8x32xbf16> to vector<4x8x32xbf16>
    %c0_2 = arith.constant 0 : index
    %c0_3 = arith.constant 0 : index
    %c0_4 = arith.constant 0 : index
    %5 = vector.load %arg2[%c0_2, %c0_3, %c0_4] : memref<4x32x24xbf16, #tpu.memory_space<vmem>>, vector<4x32x24xbf16>
    "tpu.trace_start"() <{level = 10 : i32, message = "htc,hcd->htd"}> : () -> ()
    %cst = arith.constant dense<0.000000e+00> : vector<4x8x24xf32>
    %6 = tpu.matmul %4, %5, %cst {dimension_numbers = #tpu.dot_dimension_numbers<[2], [1], [1], [2], [0, 0, 0, 1, 1, 2], [0], [0]>} : vector<4x8x32xbf16>, vector<4x32x24xbf16>, vector<4x8x24xf32> -> vector<4x8x24xf32>
    "tpu.trace_stop"() : () -> ()
    %c0_5 = arith.constant 0 : index
    %c0_6 = arith.constant 0 : index
    %c0_7 = arith.constant 0 : index
    %7 = vector.load %arg3[%c0_5, %c0_6, %c0_7] : memref<4x1x24xf32, #tpu.memory_space<vmem>>, vector<4x1x24xf32>
    %8 = vector.broadcast %7 : vector<4x1x24xf32> to vector<4x8x24xf32>
    %9 = arith.addf %6, %8 : vector<4x8x24xf32>
    %10 = vector.extract_strided_slice %9 {offsets = [0, 0, 0], sizes = [4, 8, 8], strides = [1, 1, 1]} : vector<4x8x24xf32> to vector<4x8x8xf32>
    %11 = vector.extract_strided_slice %9 {offsets = [0, 0, 8], sizes = [4, 8, 8], strides = [1, 1, 1]} : vector<4x8x24xf32> to vector<4x8x8xf32>
    %12 = vector.extract_strided_slice %9 {offsets = [0, 0, 16], sizes = [4, 8, 8], strides = [1, 1, 1]} : vector<4x8x24xf32> to vector<4x8x8xf32>
    %13 = arith.truncf %10 : vector<4x8x8xf32> to vector<4x8x8xbf16>
    %14 = arith.truncf %11 : vector<4x8x8xf32> to vector<4x8x8xbf16>
    "tpu.trace_start"() <{level = 10 : i32, message = "hqd,hkd->hqk"}> : () -> ()
    %cst_8 = arith.constant dense<0.000000e+00> : vector<4x8x8xf32>
    %15 = tpu.matmul %13, %14, %cst_8 {dimension_numbers = #tpu.dot_dimension_numbers<[2], [2], [1], [1], [0, 0, 0, 1, 1, 1], [0], [0]>} : vector<4x8x8xbf16>, vector<4x8x8xbf16>, vector<4x8x8xf32> -> vector<4x8x8xf32>
    "tpu.trace_stop"() : () -> ()
    %c0_9 = arith.constant 0 : index
    %c0_10 = arith.constant 0 : index
    %16 = vector.load %arg6[%c0_9, %c0_10] : memref<8x8xf32, #tpu.memory_space<vmem>>, vector<8x8xf32>
    %17 = vector.shape_cast %16 : vector<8x8xf32> to vector<1x8x8xf32>
    %18 = vector.broadcast %17 : vector<1x8x8xf32> to vector<4x8x8xf32>
    %19 = arith.addf %15, %18 : vector<4x8x8xf32>
    %cst_11 = arith.constant dense<0xFF800000> : vector<4x8xf32>
    %20 = vector.multi_reduction <maximumf>, %19, %cst_11 [2] : vector<4x8x8xf32> to vector<4x8xf32>
    %21 = vector.shape_cast %20 : vector<4x8xf32> to vector<4x8x1xf32>
    %22 = vector.broadcast %21 : vector<4x8x1xf32> to vector<4x8x8xf32>
    %23 = arith.subf %19, %22 : vector<4x8x8xf32>
    %24 = math.exp %23 : vector<4x8x8xf32>
    %cst_12 = arith.constant dense<0.000000e+00> : vector<4x8xf32>
    %25 = vector.multi_reduction <add>, %24, %cst_12 [2] : vector<4x8x8xf32> to vector<4x8xf32>
    %26 = vector.shape_cast %25 : vector<4x8xf32> to vector<4x8x1xf32>
    %27 = tpu.reciprocal %26 {approx = true} : vector<4x8x1xf32> -> vector<4x8x1xf32>
    %28 = vector.broadcast %27 : vector<4x8x1xf32> to vector<4x8x8xf32>
    %29 = arith.mulf %24, %28 : vector<4x8x8xf32>
    %30 = arith.truncf %29 : vector<4x8x8xf32> to vector<4x8x8xbf16>
    %31 = arith.truncf %12 : vector<4x8x8xf32> to vector<4x8x8xbf16>
    "tpu.trace_start"() <{level = 10 : i32, message = "hqk,hkd->hqd"}> : () -> ()
    %cst_13 = arith.constant dense<0.000000e+00> : vector<4x8x8xf32>
    %32 = tpu.matmul %30, %31, %cst_13 {dimension_numbers = #tpu.dot_dimension_numbers<[2], [1], [1], [2], [0, 0, 0, 1, 1, 2], [0], [0]>} : vector<4x8x8xbf16>, vector<4x8x8xbf16>, vector<4x8x8xf32> -> vector<4x8x8xf32>
    "tpu.trace_stop"() : () -> ()
    %33 = arith.truncf %32 : vector<4x8x8xf32> to vector<4x8x8xbf16>
    %c0_14 = arith.constant 0 : index
    %c0_15 = arith.constant 0 : index
    %c0_16 = arith.constant 0 : index
    %34 = vector.load %arg4[%c0_14, %c0_15, %c0_16] : memref<4x8x32xbf16, #tpu.memory_space<vmem>>, vector<4x8x32xbf16>
    "tpu.trace_start"() <{level = 10 : i32, message = "hqd,hdc->hqc"}> : () -> ()
    %cst_17 = arith.constant dense<0.000000e+00> : vector<4x8x32xf32>
    %35 = tpu.matmul %33, %34, %cst_17 {dimension_numbers = #tpu.dot_dimension_numbers<[2], [1], [1], [2], [0, 0, 0, 1, 1, 2], [0], [0]>} : vector<4x8x8xbf16>, vector<4x8x32xbf16>, vector<4x8x32xf32> -> vector<4x8x32xf32>
    "tpu.trace_stop"() : () -> ()
    %cst_18 = arith.constant dense<0.000000e+00> : vector<8x32xf32>
    %36 = vector.multi_reduction <add>, %35, %cst_18 [0] : vector<4x8x32xf32> to vector<8x32xf32>
    %c0_19 = arith.constant 0 : index
    %c0_20 = arith.constant 0 : index
    %37 = vector.load %arg5[%c0_19, %c0_20] : memref<1x32xf32, #tpu.memory_space<vmem>>, vector<1x32xf32>
    %38 = vector.broadcast %37 : vector<1x32xf32> to vector<8x32xf32>
    %39 = arith.addf %36, %38 : vector<8x32xf32>
    %c0_21 = arith.constant 0 : index
    %c0_22 = arith.constant 0 : index
    %c0_23 = arith.constant 0 : index
    %40 = vector.load %arg7[%c0_21, %c0_22, %c0_23] : memref<1x8x32xf32, #tpu.memory_space<vmem>>, vector<1x8x32xf32>
    %41 = vector.shape_cast %40 : vector<1x8x32xf32> to vector<8x32xf32>
    %42 = vector.shape_cast %39 : vector<8x32xf32> to vector<1x8x32xf32>
    tpu.vector_store %arg7[%c0_21, %c0_22, %c0_23], %42 {strides = array<i32>} : memref<1x8x32xf32, #tpu.memory_space<vmem>>, vector<1x8x32xf32>,
    return
  }
  func.func @transform_0(%arg0: i32) -> (i32, i32, i32) {
    %c0_i32 = arith.constant 0 : i32
    %c0_i32_0 = arith.constant 0 : i32
    %c0_i32_1 = arith.constant 0 : i32
    return %arg0, %c0_i32, %c0_i32_0 : i32, i32, i32
  }
  func.func @transform_1(%arg0: i32) -> (i32, i32, i32) {
    %c0_i32 = arith.constant 0 : i32
    %c0_i32_0 = arith.constant 0 : i32
    %c0_i32_1 = arith.constant 0 : i32
    %c0_i32_2 = arith.constant 0 : i32
    return %c0_i32, %c0_i32_0, %c0_i32_1 : i32, i32, i32
  }
  func.func @transform_2(%arg0: i32) -> (i32, i32, i32) {
    %c0_i32 = arith.constant 0 : i32
    %c0_i32_0 = arith.constant 0 : i32
    %c0_i32_1 = arith.constant 0 : i32
    %c0_i32_2 = arith.constant 0 : i32
    return %c0_i32, %c0_i32_0, %c0_i32_1 : i32, i32, i32
  }
  func.func @transform_3(%arg0: i32) -> (i32, i32, i32) {
    %c0_i32 = arith.constant 0 : i32
    %c0_i32_0 = arith.constant 0 : i32
    %c0_i32_1 = arith.constant 0 : i32
    %c0_i32_2 = arith.constant 0 : i32
    return %c0_i32, %c0_i32_0, %c0_i32_1 : i32, i32, i32
  }
  func.func @transform_4(%arg0: i32) -> (i32, i32) {
    %c0_i32 = arith.constant 0 : i32
    %c0_i32_0 = arith.constant 0 : i32
    %c0_i32_1 = arith.constant 0 : i32
    return %c0_i32, %c0_i32_0 : i32, i32
  }
  func.func @transform_5(%arg0: i32) -> (i32, i32) {
    %c0_i32 = arith.constant 0 : i32
    %c0_i32_0 = arith.constant 0 : i32
    %c0_i32_1 = arith.constant 0 : i32
    return %c0_i32, %c0_i32_0 : i32, i32
  }
  func.func @transform_6(%arg0: i32) -> (i32, i32, i32) {
    %c0_i32 = arith.constant 0 : i32
    %c0_i32_0 = arith.constant 0 : i32
    %c0_i32_1 = arith.constant 0 : i32
    return %arg0, %c0_i32, %c0_i32_0 : i32, i32, i32
  }
}

</mosaic_0001>

<llo_original>
// kernel: causal_self_attention.1
$region0: #{causal_self_attention.1}
  #allocation0 [shape = 'u32[]', space=smem, size = 0x4, offset = 0x4, fixed_abs, tag = 'smem constant byte address 0x4 - core index']
  #allocation1 [shape = 'u32[144,128]{1,0:T(1,128)}', space=vmem, size = 0x12000, scoped, tag = 'internal scratch']
  %s0 = inlined_call_operand.vmem [shape: bf16[2,8,32], index: 0, kind: input, shape index: {}]
  %s1 = inlined_call_operand.vmem [shape: bf16[4,32,24], index: 1, kind: input, shape index: {}]
  %s2 = inlined_call_operand.vmem [shape: f32[4,1,24], index: 2, kind: input, shape index: {}]
  %s3 = inlined_call_operand.vmem [shape: bf16[4,8,32], index: 3, kind: input, shape index: {}]
  %s4 = inlined_call_operand.vmem [shape: f32[1,32], index: 4, kind: input, shape index: {}]
  %s5 = inlined_call_operand.vmem [shape: f32[8,8], index: 5, kind: input, shape index: {}]
  %s6 = inlined_call_operand.hbm [shape: f32[2,8,32], index: 6, kind: output, shape index: {}]
  %s7 = sld [smem:[#allocation0]]
  $region57: #{causal_self_attention.1} parent=0
    _
  %s9 = ssub.s32 1, %s7
  %s10 = scalar_select 0, %s9, %s7
  $region1: #{causal_self_attention.1} parent=0
    #allocation2 [shape = 'u8[8192]{0}', space=vmem, size = 0x2000, scoped, tag = 'output window, operand 0']
    #allocation3 [shape = 's32[2]{0}', space=sflag, size = 0x8, scoped, tag = 'scoped memory for causal_self_attention.1']
    %11 = vsyncpa [#allocation3], 0
    %s12 = scalar_lea.sflag [#allocation3], 1
    %13 = vsyncpa %s12, 0
    loop: start=0, step=1, limit=4
    $region2: #{causal_self_attention.1} parent=1 // loop_pre_header
      _
    $region3: #{causal_self_attention.1} parent=1 // loop_header
      %s15 = sphi 0, %s19
      %p16 = scmp.ge.s32.totalorder %s15, 4
      %s25 = sphi 0, %s27
      %s28 = sphi 0, %s25
      %s29 = sphi 0, %s28
      %s45 = sphi 0, %s29
      %s49 = sphi 0, %s49
      %s51 = sphi 0, %s49
      %s52 = sphi 0, %s51
      %s66 = sphi 0, %s52
      %s70 = sphi 0, %s70
      %s72 = sphi 0, %s70
      %s73 = sphi 0, %s72
      %s87 = sphi 0, %s73
      %s91 = sphi 0, %s91
      %s93 = sphi 0, %s91
      %s94 = sphi 0, %s93
      %s108 = sphi 0, %s94
      %s112 = sphi 0, %s112
      %s114 = sphi 0, %s112
      %s115 = sphi 0, %s114
      %s129 = sphi 0, %s115
      %s133 = sphi 0, %s133
      %s135 = sphi 0, %s133
      %s136 = sphi 0, %s135
      %s150 = sphi 0, %s136
      %s156 = sphi 0, %s158
      %s159 = sphi 0, %s156
      %s160 = sphi 0, %s159
      %s176 = sphi 0, %s160
    $region4: #{causal_self_attention.1} parent=1 // loop_header_branch
      %18 = sbr.rel (%p16) target = $region8
    $region5: #{causal_self_attention.1} parent=1 // loop_body
      %s20 = ssub.s32 %s15, 1
      %s21 = ssub.s32 %s15, 2
      %s22 = sadd.s32 %s15, 1
      %s23 = ssub.s32 %s15, %s22
      %p24 = scmp.eq.s32.totalorder %s23, 0
      %s26 = sadd.s32 %s25, 1
      %s27 = scalar_select %p24, %s25, %s26
      %p30 = pneg %p24
      %p31 = scmp.eq.s32.totalorder %s15, 1
      %p32 = por %p30, %p31
      %p33 = scmp.ne.s32.totalorder %s25, %s28
      %p34 = scmp.eq.s32.totalorder %s15, 0
      %p35 = por %p33, %p34
      %p36 = scmp.ne.s32.totalorder %s25, %s28
      %p37 = scmp.eq.s32.totalorder %s20, 1
      %p38 = por %p36, %p37
      %p39 = scmp.ne.s32.totalorder %s28, %s29
      %p40 = scmp.eq.s32.totalorder %s20, 0
      %p41 = por %p39, %p40
      %p42 = scmp.ne.s32.totalorder %s28, %s29
      %p43 = scmp.eq.s32.totalorder %s21, 1
      %p44 = por %p42, %p43
      %p46 = scmp.ne.s32.totalorder %s29, %s45
      %p47 = scmp.eq.s32.totalorder %s21, 0
      %p48 = por %p46, %p47
      %s50 = sadd.s32 %s49, 1
      %p53 = scmp.eq.s32.totalorder %s15, 1
      %p54 = scmp.ne.s32.totalorder %s49, %s51
      %p55 = scmp.eq.s32.totalorder %s15, 0
      %p56 = por %p54, %p55
      %p57 = scmp.ne.s32.totalorder %s49, %s51
      %p58 = scmp.eq.s32.totalorder %s20, 1
      %p59 = por %p57, %p58
      %p60 = scmp.ne.s32.totalorder %s51, %s52
      %p61 = scmp.eq.s32.totalorder %s20, 0
      %p62 = por %p60, %p61
      %p63 = scmp.ne.s32.totalorder %s51, %s52
      %p64 = scmp.eq.s32.totalorder %s21, 1
      %p65 = por %p63, %p64
      %p67 = scmp.ne.s32.totalorder %s52, %s66
      %p68 = scmp.eq.s32.totalorder %s21, 0
      %p69 = por %p67, %p68
      %s71 = sadd.s32 %s70, 1
      %p74 = scmp.eq.s32.totalorder %s15, 1
      %p75 = scmp.ne.s32.totalorder %s70, %s72
      %p76 = scmp.eq.s32.totalorder %s15, 0
      %p77 = por %p75, %p76
      %p78 = scmp.ne.s32.totalorder %s70, %s72
      %p79 = scmp.eq.s32.totalorder %s20, 1
      %p80 = por %p78, %p79
      %p81 = scmp.ne.s32.totalorder %s72, %s73
      %p82 = scmp.eq.s32.totalorder %s20, 0
      %p83 = por %p81, %p82
      %p84 = scmp.ne.s32.totalorder %s72, %s73
      %p85 = scmp.eq.s32.totalorder %s21, 1
      %p86 = por %p84, %p85
      %p88 = scmp.ne.s32.totalorder %s73, %s87
      %p89 = scmp.eq.s32.totalorder %s21, 0
      %p90 = por %p88, %p89
      %s92 = sadd.s32 %s91, 1
      %p95 = scmp.eq.s32.totalorder %s15, 1
      %p96 = scmp.ne.s32.totalorder %s91, %s93
      %p97 = scmp.eq.s32.totalorder %s15, 0
      %p98 = por %p96, %p97
      %p99 = scmp.ne.s32.totalorder %s91, %s93
      %p100 = scmp.eq.s32.totalorder %s20, 1
      %p101 = por %p99, %p100
      %p102 = scmp.ne.s32.totalorder %s93, %s94
      %p103 = scmp.eq.s32.totalorder %s20, 0
      %p104 = por %p102, %p103
      %p105 = scmp.ne.s32.totalorder %s93, %s94
      %p106 = scmp.eq.s32.totalorder %s21, 1
      %p107 = por %p105, %p106
      %p109 = scmp.ne.s32.totalorder %s94, %s108
      %p110 = scmp.eq.s32.totalorder %s21, 0
      %p111 = por %p109, %p110
      %s113 = sadd.s32 %s112, 1
      %p116 = scmp.eq.s32.totalorder %s15, 1
      %p117 = scmp.ne.s32.totalorder %s112, %s114
      %p118 = scmp.eq.s32.totalorder %s15, 0
      %p119 = por %p117, %p118
      %p120 = scmp.ne.s32.totalorder %s112, %s114
      %p121 = scmp.eq.s32.totalorder %s20, 1
      %p122 = por %p120, %p121
      %p123 = scmp.ne.s32.totalorder %s114, %s115
      %p124 = scmp.eq.s32.totalorder %s20, 0
      %p125 = por %p123, %p124
      %p126 = scmp.ne.s32.totalorder %s114, %s115
      %p127 = scmp.eq.s32.totalorder %s21, 1
      %p128 = por %p126, %p127
      %p130 = scmp.ne.s32.totalorder %s115, %s129
      %p131 = scmp.eq.s32.totalorder %s21, 0
      %p132 = por %p130, %p131
      %s134 = sadd.s32 %s133, 1
      %p137 = scmp.eq.s32.totalorder %s15, 1
      %p138 = scmp.ne.s32.totalorder %s133, %s135
      %p139 = scmp.eq.s32.totalorder %s15, 0
      %p140 = por %p138, %p139
      %p141 = scmp.ne.s32.totalorder %s133, %s135
      %p142 = scmp.eq.s32.totalorder %s20, 1
      %p143 = por %p141, %p142
      %p144 = scmp.ne.s32.totalorder %s135, %s136
      %p145 = scmp.eq.s32.totalorder %s20, 0
      %p146 = por %p144, %p145
      %p147 = scmp.ne.s32.totalorder %s135, %s136
      %p148 = scmp.eq.s32.totalorder %s21, 1
      %p149 = por %p147, %p148
      %p151 = scmp.ne.s32.totalorder %s136, %s150
      %p152 = scmp.eq.s32.totalorder %s21, 0
      %p153 = por %p151, %p152
      %s154 = ssub.s32 %s15, %s22
      %p155 = scmp.eq.s32.totalorder %s154, 0
      %s157 = sadd.s32 %s156, 1
      %s158 = scalar_select %p155, %s156, %s157
      %p161 = pneg %p155
      %p162 = scmp.eq.s32.totalorder %s15, 1
      %p163 = por %p161, %p162
      %p164 = scmp.ne.s32.totalorder %s156, %s159
      %p165 = scmp.eq.s32.totalorder %s15, 0
      %p166 = por %p164, %p165
      %p167 = scmp.ne.s32.totalorder %s156, %s159
      %p168 = scmp.eq.s32.totalorder %s20, 1
      %p169 = por %p167, %p168
      %p170 = scmp.ne.s32.totalorder %s159, %s160
      %p171 = scmp.eq.s32.totalorder %s20, 0
      %p172 = por %p170, %p171
      %p173 = scmp.ne.s32.totalorder %s159, %s160
      %p174 = scmp.eq.s32.totalorder %s21, 1
      %p175 = por %p173, %p174
      %p177 = scmp.ne.s32.totalorder %s160, %s176
      %p178 = scmp.eq.s32.totalorder %s21, 0
      %p179 = por %p177, %p178
      %p180 = scmp.le.s32.totalorder 1, %s15
      %p181 = scmp.lt.s32.totalorder %s15, 3
      %p182 = pnand %p180, %p181
      %p183 = pneg %p182
      // Predicated region
      $region9: #{causal_self_attention.1} parent=5 // pred_check
        _
      $region10: #{causal_self_attention.1} parent=5 // pred_check_branch
        %185 = sbr.rel (%p182) target = $region12
      $region11: #{causal_self_attention.1} parent=5 // pred_region
        %s186 = ssub.s32 %s15, 1
        // Predicated region
        $region13: #{causal_self_attention.1} parent=11 // pred_check
          %p187 = pneg %p62
        $region14: #{causal_self_attention.1} parent=11 // pred_check_branch
          %189 = sbr.rel (%p187) target = $region16
        $region15: #{causal_self_attention.1} parent=11 // pred_region
          _
        $region16: #{causal_self_attention.1} parent=11 // pred_fallthru
          _
        // Predicated region
        $region17: #{causal_self_attention.1} parent=11 // pred_check
          %p190 = pneg %p83
        $region18: #{causal_self_attention.1} parent=11 // pred_check_branch
          %192 = sbr.rel (%p190) target = $region20
        $region19: #{causal_self_attention.1} parent=11 // pred_region
          _
        $region20: #{causal_self_attention.1} parent=11 // pred_fallthru
          _
        // Predicated region
        $region21: #{causal_self_attention.1} parent=11 // pred_check
          %p193 = pneg %p104
        $region22: #{causal_self_attention.1} parent=11 // pred_check_branch
          %195 = sbr.rel (%p193) target = $region24
        $region23: #{causal_self_attention.1} parent=11 // pred_region
          _
        $region24: #{causal_self_attention.1} parent=11 // pred_fallthru
          _
        // Predicated region
        $region25: #{causal_self_attention.1} parent=11 // pred_check
          %p196 = pneg %p125
        $region26: #{causal_self_attention.1} parent=11 // pred_check_branch
          %198 = sbr.rel (%p196) target = $region28
        $region27: #{causal_self_attention.1} parent=11 // pred_region
          _
        $region28: #{causal_self_attention.1} parent=11 // pred_fallthru
          _
        // Predicated region
        $region29: #{causal_self_attention.1} parent=11 // pred_check
          %p199 = pneg %p146
        $region30: #{causal_self_attention.1} parent=11 // pred_check_branch
          %201 = sbr.rel (%p199) target = $region32
        $region31: #{causal_self_attention.1} parent=11 // pred_region
          _
        $region32: #{causal_self_attention.1} parent=11 // pred_fallthru
          _
      $region12: #{causal_self_attention.1} parent=5 // pred_fallthru
        _
      %p202 = scmp.lt.s32.totalorder %s15, 2
      // Predicated region
      $region33: #{causal_self_attention.1} parent=5 // pred_check
        %p203 = pneg %p202
      $region34: #{causal_self_attention.1} parent=5 // pred_check_branch
        %205 = sbr.rel (%p203) target = $region36
      $region35: #{causal_self_attention.1} parent=5 // pred_region
        // Predicated region
        $region37: #{causal_self_attention.1} parent=35 // pred_check
          %p206 = pneg %p35
        $region38: #{causal_self_attention.1} parent=35 // pred_check_branch
          %208 = sbr.rel (%p206) target = $region40
        $region39: #{causal_self_attention.1} parent=35 // pred_region
          %p209 = scmp.lt.s32.totalorder %s15, 1
          %s210 = scalar_select %p209, %s15, 1
          %s211 = smul.addr %s210, 4
          %s212 = scalar_lea.vmem %s0, %s211
        $region40: #{causal_self_attention.1} parent=35 // pred_fallthru
          _
      $region36: #{causal_self_attention.1} parent=5 // pred_fallthru
        _
      %p213 = scmp.le.s32.totalorder 1, %s15
      %p214 = scmp.lt.s32.totalorder %s15, 3
      %p215 = pnand %p213, %p214
      %p216 = pneg %p215
      // Predicated region
      $region41: #{causal_self_attention.1} parent=5 // pred_check
        _
      $region42: #{causal_self_attention.1} parent=5 // pred_check_branch
        %218 = sbr.rel (%p215) target = $region44
      $region43: #{causal_self_attention.1} parent=5 // pred_region
        %s219 = ssub.s32 %s15, 1
        %p220 = scmp.lt.s32.totalorder %s20, 1
        %s221 = scalar_select %p220, %s20, 1
        %s222 = smul.addr %s221, 4
        %s223 = scalar_lea.vmem %s0, %s222
        %p224 = pneg %p41
        %p225 = pneg %p38
        %p226 = pneg %p62
        %p227 = pneg %p59
        %p228 = pneg %p83
        %p229 = pneg %p80
        %p230 = pneg %p104
        %p231 = pneg %p101
        %p232 = pneg %p125
        %p233 = pneg %p122
        %p234 = pneg %p146
        %p235 = pneg %p143
        %p236 = pneg %p172
        %p237 = pneg %p169
        %s238 = sand.u32 %s159, 1
        %s239 = scalar_lea.sflag [#allocation3], %s238
        %s240 = sand.u32 %s159, 1
        %s241 = smul.addr %s240, 8
        %s242 = scalar_lea.vmem [#allocation2], %s241
        %p243 = scmp.lt.s32.totalorder %s20, 1
        %s244 = scalar_select %p243, %s20, 1
        %s245 = smul.addr %s244, 4
        %s246 = scalar_lea.vmem %s0, %s245
        %v248 = vld [vmem:[%s246] sm:$0xf]
        %v249 = vld [vmem:[%s1] sm:$0xf]
        %v250 = vld [vmem:[%s1 + $0x4] sm:$0xf]
        %v251 = vld [vmem:[%s1 + $0x8] sm:$0xf]
        %v252 = vld [vmem:[%s1 + $0xc] sm:$0xf]
        %v253 = vld [vmem:[%s1 + $0x10] sm:$0xf]
        %v254 = vld [vmem:[%s1 + $0x14] sm:$0xf]
        %v255 = vld [vmem:[%s1 + $0x18] sm:$0xf]
        %v256 = vld [vmem:[%s1 + $0x1c] sm:$0xf]
        %v257 = vld [vmem:[%s1 + $0x20] sm:$0xf]
        %v258 = vld [vmem:[%s1 + $0x24] sm:$0xf]
        %v259 = vld [vmem:[%s1 + $0x28] sm:$0xf]
        %v260 = vld [vmem:[%s1 + $0x2c] sm:$0xf]
        %v261 = vld [vmem:[%s1 + $0x30] sm:$0xf]
        %v262 = vld [vmem:[%s1 + $0x34] sm:$0xf]
        %v263 = vld [vmem:[%s1 + $0x38] sm:$0xf]
        %v264 = vld [vmem:[%s1 + $0x3c] sm:$0xf]
        %v265 = vld [vmem:[%s2] sm:$0x1]
        %v266 = vld [vmem:[%s2 + $0x1] sm:$0x1]
        %v267 = vld [vmem:[%s2 + $0x2] sm:$0x1]
        %v268 = vld [vmem:[%s2 + $0x3] sm:$0x1]
        %v273 = vlaneseq
        %v274 = vshrl.u32 %v273, 7
        %v275 = vsub.s32 0, %v274
        %v276 = vrot.slane %v265, %v275
        %v277 = vlaneseq
        %v278 = vshrl.u32 %v277, 7
        %v279 = vsub.s32 0, %v278
        %v280 = vrot.slane %v266, %v279
        %v281 = vlaneseq
        %v282 = vshrl.u32 %v281, 7
        %v283 = vsub.s32 0, %v282
        %v284 = vrot.slane %v267, %v283
        %v285 = vlaneseq
        %v286 = vshrl.u32 %v285, 7
        %v287 = vsub.s32 0, %v286
        %v288 = vrot.slane %v268, %v287
        %v297 = vunpack.c.l.b16 %v249
        %v298 = vunpack.c.l.b16 %v250
        %v299 = vunpack.c.l.b16 %v251
        %v300 = vunpack.c.l.b16 %v252
        %v301 = vpack.c.b16 %v298, %v297
        %v302 = vpack.c.b16 %v300, %v299
        %vm305 = vcmask 261120
        %v307 = vsel %vm305, %v248, 0
        %309 = vmatprep.subr.bf16.mxu0 0
        %310 = vmatpush1.bf16.msra.mxu0 %v301
        %311 = vmatprep.subr.bf16.mxu0 0
        %312 = vmatpush1.bf16.msra.mxu0 %v302
        %313 = vmatprep.subr.bf16.mxu0 0
        %314 = vmatpush1.bf16.msra.mxu0 0
        %315 = vmatprep.subr.bf16.mxu0 0
        %316 = vmatpush1.bf16.msra.mxu0 0
        %317 = vmatprep.subr.bf16.mxu0 0
        %318 = vmatpush1.bf16.msra.mxu0 0
        %319 = vmatprep.subr.bf16.mxu0 0
        %320 = vmatpush1.bf16.msra.mxu0 0
        %321 = vmatprep.subr.bf16.mxu0 0
        %322 = vmatpush1.bf16.msra.mxu0 0
        %323 = vmatprep.subr.bf16.mxu0 0
        %324 = vmatpush1.bf16.msra.mxu0 0
        %325 = vmatprep.subr.bf16.mxu0 0
        %326 = vmatpush1.bf16.msra.mxu0 0
        %327 = vmatprep.subr.bf16.mxu0 0
        %328 = vmatpush1.bf16.msra.mxu0 0
        %329 = vmatprep.subr.bf16.mxu0 0
        %330 = vmatpush1.bf16.msra.mxu0 0
        %331 = vmatprep.subr.bf16.mxu0 0
        %332 = vmatpush1.bf16.msra.mxu0 0
        %333 = vmatprep.subr.bf16.mxu0 0
        %334 = vmatpush1.bf16.msra.mxu0 0
        %335 = vmatprep.subr.bf16.mxu0 0
        %336 = vmatpush1.bf16.msra.mxu0 0
        %337 = vmatprep.subr.bf16.mxu0 0
        %338 = vmatpush1.bf16.msra.mxu0 0
        %339 = vmatprep.subr.bf16.mxu0 0
        %340 = vmatpush1.bf16.msra.mxu0 0
        %341 = vmatprep.mubr.bf16.mxu0 0
        %342 = vmatmul.mubr.bf16.gmra.mrb[0].mxu0 %v307
        %v343 = vpop.f32.mrb[0].mxu0
        %v344 = vadd.f32 %v276, %v343
        %v345 = vpop.f32.mrb[0].mxu0
        %v346 = vpop.f32.mrb[0].mxu0
        %v347 = vpop.f32.mrb[0].mxu0
        %348 = vdwg.mxu0
        %v353 = vunpack.c.l.b16 %v253
        %v354 = vunpack.c.l.b16 %v254
        %v355 = vunpack.c.l.b16 %v255
        %v356 = vunpack.c.l.b16 %v256
        %v357 = vpack.c.b16 %v354, %v353
        %v358 = vpack.c.b16 %v356, %v355
        %361 = vmatprep.subr.bf16.mxu0 0
        %362 = vmatpush1.bf16.msra.mxu0 %v357
        %363 = vmatprep.subr.bf16.mxu0 0
        %364 = vmatpush1.bf16.msra.mxu0 %v358
        %365 = vmatprep.subr.bf16.mxu0 0
        %366 = vmatpush1.bf16.msra.mxu0 0
        %367 = vmatprep.subr.bf16.mxu0 0
        %368 = vmatpush1.bf16.msra.mxu0 0
        %369 = vmatprep.subr.bf16.mxu0 0
        %370 = vmatpush1.bf16.msra.mxu0 0
        %371 = vmatprep.subr.bf16.mxu0 0
        %372 = vmatpush1.bf16.msra.mxu0 0
        %373 = vmatprep.subr.bf16.mxu0 0
        %374 = vmatpush1.bf16.msra.mxu0 0
        %375 = vmatprep.subr.bf16.mxu0 0
        %376 = vmatpush1.bf16.msra.mxu0 0
        %377 = vmatprep.subr.bf16.mxu0 0
        %378 = vmatpush1.bf16.msra.mxu0 0
        %379 = vmatprep.subr.bf16.mxu0 0
        %380 = vmatpush1.bf16.msra.mxu0 0
        %381 = vmatprep.subr.bf16.mxu0 0
        %382 = vmatpush1.bf16.msra.mxu0 0
        %383 = vmatprep.subr.bf16.mxu0 0
        %384 = vmatpush1.bf16.msra.mxu0 0
        %385 = vmatprep.subr.bf16.mxu0 0
        %386 = vmatpush1.bf16.msra.mxu0 0
        %387 = vmatprep.subr.bf16.mxu0 0
        %388 = vmatpush1.bf16.msra.mxu0 0
        %389 = vmatprep.subr.bf16.mxu0 0
        %390 = vmatpush1.bf16.msra.mxu0 0
        %391 = vmatprep.subr.bf16.mxu0 0
        %392 = vmatpush1.bf16.msra.mxu0 0
        %393 = vmatprep.mubr.bf16.mxu0 0
        %394 = vmatmul.mubr.bf16.gmra.mrb[0].mxu0 %v307
        %v395 = vpop.f32.mrb[0].mxu0
        %v396 = vadd.f32 %v280, %v395
        %v397 = vpop.f32.mrb[0].mxu0
        %v398 = vpop.f32.mrb[0].mxu0
        %v399 = vpop.f32.mrb[0].mxu0
        %400 = vdwg.mxu0
        %v405 = vunpack.c.l.b16 %v257
        %v406 = vunpack.c.l.b16 %v258
        %v407 = vunpack.c.l.b16 %v259
        %v408 = vunpack.c.l.b16 %v260
        %v409 = vpack.c.b16 %v406, %v405
        %v410 = vpack.c.b16 %v408, %v407
        %413 = vmatprep.subr.bf16.mxu0 0
        %414 = vmatpush1.bf16.msra.mxu0 %v409
        %415 = vmatprep.subr.bf16.mxu0 0
        %416 = vmatpush1.bf16.msra.mxu0 %v410
        %417 = vmatprep.subr.bf16.mxu0 0
        %418 = vmatpush1.bf16.msra.mxu0 0
        %419 = vmatprep.subr.bf16.mxu0 0
        %420 = vmatpush1.bf16.msra.mxu0 0
        %421 = vmatprep.subr.bf16.mxu0 0
        %422 = vmatpush1.bf16.msra.mxu0 0
        %423 = vmatprep.subr.bf16.mxu0 0
        %424 = vmatpush1.bf16.msra.mxu0 0
        %425 = vmatprep.subr.bf16.mxu0 0
        %426 = vmatpush1.bf16.msra.mxu0 0
        %427 = vmatprep.subr.bf16.mxu0 0
        %428 = vmatpush1.bf16.msra.mxu0 0
        %429 = vmatprep.subr.bf16.mxu0 0
        %430 = vmatpush1.bf16.msra.mxu0 0
        %431 = vmatprep.subr.bf16.mxu0 0
        %432 = vmatpush1.bf16.msra.mxu0 0
        %433 = vmatprep.subr.bf16.mxu0 0
        %434 = vmatpush1.bf16.msra.mxu0 0
        %435 = vmatprep.subr.bf16.mxu0 0
        %436 = vmatpush1.bf16.msra.mxu0 0
        %437 = vmatprep.subr.bf16.mxu0 0
        %438 = vmatpush1.bf16.msra.mxu0 0
        %439 = vmatprep.subr.bf16.mxu0 0
        %440 = vmatpush1.bf16.msra.mxu0 0
        %441 = vmatprep.subr.bf16.mxu0 0
        %442 = vmatpush1.bf16.msra.mxu0 0
        %443 = vmatprep.subr.bf16.mxu0 0
        %444 = vmatpush1.bf16.msra.mxu0 0
        %445 = vmatprep.mubr.bf16.mxu0 0
        %446 = vmatmul.mubr.bf16.gmra.mrb[0].mxu0 %v307
        %v447 = vpop.f32.mrb[0].mxu0
        %v448 = vadd.f32 %v284, %v447
        %v449 = vpop.f32.mrb[0].mxu0
        %v450 = vpop.f32.mrb[0].mxu0
        %v451 = vpop.f32.mrb[0].mxu0
        %452 = vdwg.mxu0
        %v457 = vunpack.c.l.b16 %v261
        %v458 = vunpack.c.l.b16 %v262
        %v459 = vunpack.c.l.b16 %v263
        %v460 = vunpack.c.l.b16 %v264
        %v461 = vpack.c.b16 %v458, %v457
        %v462 = vpack.c.b16 %v460, %v459
        %465 = vmatprep.subr.bf16.mxu0 0
        %466 = vmatpush1.bf16.msra.mxu0 %v461
        %467 = vmatprep.subr.bf16.mxu0 0
        %468 = vmatpush1.bf16.msra.mxu0 %v462
        %469 = vmatprep.subr.bf16.mxu0 0
        %470 = vmatpush1.bf16.msra.mxu0 0
        %471 = vmatprep.subr.bf16.mxu0 0
        %472 = vmatpush1.bf16.msra.mxu0 0
        %473 = vmatprep.subr.bf16.mxu0 0
        %474 = vmatpush1.bf16.msra.mxu0 0
        %475 = vmatprep.subr.bf16.mxu0 0
        %476 = vmatpush1.bf16.msra.mxu0 0
        %477 = vmatprep.subr.bf16.mxu0 0
        %478 = vmatpush1.bf16.msra.mxu0 0
        %479 = vmatprep.subr.bf16.mxu0 0
        %480 = vmatpush1.bf16.msra.mxu0 0
        %481 = vmatprep.subr.bf16.mxu0 0
        %482 = vmatpush1.bf16.msra.mxu0 0
        %483 = vmatprep.subr.bf16.mxu0 0
        %484 = vmatpush1.bf16.msra.mxu0 0
        %485 = vmatprep.subr.bf16.mxu0 0
        %486 = vmatpush1.bf16.msra.mxu0 0
        %487 = vmatprep.subr.bf16.mxu0 0
        %488 = vmatpush1.bf16.msra.mxu0 0
        %489 = vmatprep.subr.bf16.mxu0 0
        %490 = vmatpush1.bf16.msra.mxu0 0
        %491 = vmatprep.subr.bf16.mxu0 0
        %492 = vmatpush1.bf16.msra.mxu0 0
        %493 = vmatprep.subr.bf16.mxu0 0
        %494 = vmatpush1.bf16.msra.mxu0 0
        %495 = vmatprep.subr.bf16.mxu0 0
        %496 = vmatpush1.bf16.msra.mxu0 0
        %497 = vmatprep.mubr.bf16.mxu0 0
        %498 = vmatmul.mubr.bf16.gmra.mrb[0].mxu0 %v307
        %v499 = vpop.f32.mrb[0].mxu0
        %v500 = vadd.f32 %v288, %v499
        %v501 = vpop.f32.mrb[0].mxu0
        %v502 = vpop.f32.mrb[0].mxu0
        %v503 = vpop.f32.mrb[0].mxu0
        %504 = vdwg.mxu0
        %v505 = vpack.c.bf16 %v344, %v344
        %v506 = vpack.c.bf16 %v396, %v396
        %v507 = vpack.c.bf16 %v448, %v448
        %v508 = vpack.c.bf16 %v500, %v500
        %v509 = vld [vmem:[%s5] sm:$0xff]
        %511 = vrot.lane.b32.xlu0 %v505, 120
        %v512 = vpop.permute.xlu0 %511
        %vm513 = vcmask 64512
        %v515 = vsel %vm513, %v505, 0
        %v518 = vsel %vm513, %v512, 0
        %520 = vmatprep.subr.bf16.mxu0 0
        %521 = vmatpush1.bf16.xpose.msra.mxu0 %v518
        %522 = vmatprep.subr.bf16.mxu0 0
        %523 = vmatpush1.bf16.xpose.msra.mxu0 0
        %524 = vmatprep.subr.bf16.mxu0 0
        %525 = vmatpush1.bf16.xpose.msra.mxu0 0
        %526 = vmatprep.subr.bf16.mxu0 0
        %527 = vmatpush1.bf16.xpose.msra.mxu0 0
        %528 = vmatprep.subr.bf16.mxu0 0
        %529 = vmatpush1.bf16.xpose.msra.mxu0 0
        %530 = vmatprep.subr.bf16.mxu0 0
        %531 = vmatpush1.bf16.xpose.msra.mxu0 0
        %532 = vmatprep.subr.bf16.mxu0 0
        %533 = vmatpush1.bf16.xpose.msra.mxu0 0
        %534 = vmatprep.subr.bf16.mxu0 0
        %535 = vmatpush1.bf16.xpose.msra.mxu0 0
        %536 = vmatprep.subr.bf16.mxu0 0
        %537 = vmatpush1.bf16.xpose.msra.mxu0 0
        %538 = vmatprep.subr.bf16.mxu0 0
        %539 = vmatpush1.bf16.xpose.msra.mxu0 0
        %540 = vmatprep.subr.bf16.mxu0 0
        %541 = vmatpush1.bf16.xpose.msra.mxu0 0
        %542 = vmatprep.subr.bf16.mxu0 0
        %543 = vmatpush1.bf16.xpose.msra.mxu0 0
        %544 = vmatprep.subr.bf16.mxu0 0
        %545 = vmatpush1.bf16.xpose.msra.mxu0 0
        %546 = vmatprep.subr.bf16.mxu0 0
        %547 = vmatpush1.bf16.xpose.msra.mxu0 0
        %548 = vmatprep.subr.bf16.mxu0 0
        %549 = vmatpush1.bf16.xpose.msra.mxu0 0
        %550 = vmatprep.subr.bf16.mxu0 0
        %551 = vmatpush1.bf16.xpose.msra.mxu0 0
        %552 = vmatprep.mubr.bf16.mxu0 0
        %553 = vmatmul.mubr.bf16.gmra.mrb[0].mxu0 %v515
        %v554 = vpop.f32.mrb[0].mxu0
        %v555 = vadd.f32 %v509, %v554
        %v556 = vpop.f32.mrb[0].mxu0
        %v557 = vpop.f32.mrb[0].mxu0
        %v558 = vpop.f32.mrb[0].mxu0
        %559 = vdwg.mxu0
        %561 = vrot.lane.b32.xlu0 %v506, 120
        %v562 = vpop.permute.xlu0 %561
        %v564 = vsel %vm513, %v506, 0
        %v567 = vsel %vm513, %v562, 0
        %569 = vmatprep.subr.bf16.mxu0 0
        %570 = vmatpush1.bf16.xpose.msra.mxu0 %v567
        %571 = vmatprep.subr.bf16.mxu0 0
        %572 = vmatpush1.bf16.xpose.msra.mxu0 0
        %573 = vmatprep.subr.bf16.mxu0 0
        %574 = vmatpush1.bf16.xpose.msra.mxu0 0
        %575 = vmatprep.subr.bf16.mxu0 0
        %576 = vmatpush1.bf16.xpose.msra.mxu0 0
        %577 = vmatprep.subr.bf16.mxu0 0
        %578 = vmatpush1.bf16.xpose.msra.mxu0 0
        %579 = vmatprep.subr.bf16.mxu0 0
        %580 = vmatpush1.bf16.xpose.msra.mxu0 0
        %581 = vmatprep.subr.bf16.mxu0 0
        %582 = vmatpush1.bf16.xpose.msra.mxu0 0
        %583 = vmatprep.subr.bf16.mxu0 0
        %584 = vmatpush1.bf16.xpose.msra.mxu0 0
        %585 = vmatprep.subr.bf16.mxu0 0
        %586 = vmatpush1.bf16.xpose.msra.mxu0 0
        %587 = vmatprep.subr.bf16.mxu0 0
        %588 = vmatpush1.bf16.xpose.msra.mxu0 0
        %589 = vmatprep.subr.bf16.mxu0 0
        %590 = vmatpush1.bf16.xpose.msra.mxu0 0
        %591 = vmatprep.subr.bf16.mxu0 0
        %592 = vmatpush1.bf16.xpose.msra.mxu0 0
        %593 = vmatprep.subr.bf16.mxu0 0
        %594 = vmatpush1.bf16.xpose.msra.mxu0 0
        %595 = vmatprep.subr.bf16.mxu0 0
        %596 = vmatpush1.bf16.xpose.msra.mxu0 0
        %597 = vmatprep.subr.bf16.mxu0 0
        %598 = vmatpush1.bf16.xpose.msra.mxu0 0
        %599 = vmatprep.subr.bf16.mxu0 0
        %600 = vmatpush1.bf16.xpose.msra.mxu0 0
        %601 = vmatprep.mubr.bf16.mxu0 0
        %602 = vmatmul.mubr.bf16.gmra.mrb[0].mxu0 %v564
        %v603 = vpop.f32.mrb[0].mxu0
        %v604 = vadd.f32 %v509, %v603
        %v605 = vpop.f32.mrb[0].mxu0
        %v606 = vpop.f32.mrb[0].mxu0
        %v607 = vpop.f32.mrb[0].mxu0
        %608 = vdwg.mxu0
        %610 = vrot.lane.b32.xlu0 %v507, 120
        %v611 = vpop.permute.xlu0 %610
        %v613 = vsel %vm513, %v507, 0
        %v616 = vsel %vm513, %v611, 0
        %618 = vmatprep.subr.bf16.mxu0 0
        %619 = vmatpush1.bf16.xpose.msra.mxu0 %v616
        %620 = vmatprep.subr.bf16.mxu0 0
        %621 = vmatpush1.bf16.xpose.msra.mxu0 0
        %622 = vmatprep.subr.bf16.mxu0 0
        %623 = vmatpush1.bf16.xpose.msra.mxu0 0
        %624 = vmatprep.subr.bf16.mxu0 0
        %625 = vmatpush1.bf16.xpose.msra.mxu0 0
        %626 = vmatprep.subr.bf16.mxu0 0
        %627 = vmatpush1.bf16.xpose.msra.mxu0 0
        %628 = vmatprep.subr.bf16.mxu0 0
        %629 = vmatpush1.bf16.xpose.msra.mxu0 0
        %630 = vmatprep.subr.bf16.mxu0 0
        %631 = vmatpush1.bf16.xpose.msra.mxu0 0
        %632 = vmatprep.subr.bf16.mxu0 0
        %633 = vmatpush1.bf16.xpose.msra.mxu0 0
        %634 = vmatprep.subr.bf16.mxu0 0
        %635 = vmatpush1.bf16.xpose.msra.mxu0 0
        %636 = vmatprep.subr.bf16.mxu0 0
        %637 = vmatpush1.bf16.xpose.msra.mxu0 0
        %638 = vmatprep.subr.bf16.mxu0 0
        %639 = vmatpush1.bf16.xpose.msra.mxu0 0
        %640 = vmatprep.subr.bf16.mxu0 0
        %641 = vmatpush1.bf16.xpose.msra.mxu0 0
        %642 = vmatprep.subr.bf16.mxu0 0
        %643 = vmatpush1.bf16.xpose.msra.mxu0 0
        %644 = vmatprep.subr.bf16.mxu0 0
        %645 = vmatpush1.bf16.xpose.msra.mxu0 0
        %646 = vmatprep.subr.bf16.mxu0 0
        %647 = vmatpush1.bf16.xpose.msra.mxu0 0
        %648 = vmatprep.subr.bf16.mxu0 0
        %649 = vmatpush1.bf16.xpose.msra.mxu0 0
        %650 = vmatprep.mubr.bf16.mxu0 0
        %651 = vmatmul.mubr.bf16.gmra.mrb[0].mxu0 %v613
        %v652 = vpop.f32.mrb[0].mxu0
        %v653 = vadd.f32 %v509, %v652
        %v654 = vpop.f32.mrb[0].mxu0
        %v655 = vpop.f32.mrb[0].mxu0
        %v656 = vpop.f32.mrb[0].mxu0
        %657 = vdwg.mxu0
        %659 = vrot.lane.b32.xlu0 %v508, 120
        %v660 = vpop.permute.xlu0 %659
        %v662 = vsel %vm513, %v508, 0
        %v665 = vsel %vm513, %v660, 0
        %667 = vmatprep.subr.bf16.mxu0 0
        %668 = vmatpush1.bf16.xpose.msra.mxu0 %v665
        %669 = vmatprep.subr.bf16.mxu0 0
        %670 = vmatpush1.bf16.xpose.msra.mxu0 0
        %671 = vmatprep.subr.bf16.mxu0 0
        %672 = vmatpush1.bf16.xpose.msra.mxu0 0
        %673 = vmatprep.subr.bf16.mxu0 0
        %674 = vmatpush1.bf16.xpose.msra.mxu0 0
        %675 = vmatprep.subr.bf16.mxu0 0
        %676 = vmatpush1.bf16.xpose.msra.mxu0 0
        %677 = vmatprep.subr.bf16.mxu0 0
        %678 = vmatpush1.bf16.xpose.msra.mxu0 0
        %679 = vmatprep.subr.bf16.mxu0 0
        %680 = vmatpush1.bf16.xpose.msra.mxu0 0
        %681 = vmatprep.subr.bf16.mxu0 0
        %682 = vmatpush1.bf16.xpose.msra.mxu0 0
        %683 = vmatprep.subr.bf16.mxu0 0
        %684 = vmatpush1.bf16.xpose.msra.mxu0 0
        %685 = vmatprep.subr.bf16.mxu0 0
        %686 = vmatpush1.bf16.xpose.msra.mxu0 0
        %687 = vmatprep.subr.bf16.mxu0 0
        %688 = vmatpush1.bf16.xpose.msra.mxu0 0
        %689 = vmatprep.subr.bf16.mxu0 0
        %690 = vmatpush1.bf16.xpose.msra.mxu0 0
        %691 = vmatprep.subr.bf16.mxu0 0
        %692 = vmatpush1.bf16.xpose.msra.mxu0 0
        %693 = vmatprep.subr.bf16.mxu0 0
        %694 = vmatpush1.bf16.xpose.msra.mxu0 0
        %695 = vmatprep.subr.bf16.mxu0 0
        %696 = vmatpush1.bf16.xpose.msra.mxu0 0
        %697 = vmatprep.subr.bf16.mxu0 0
        %698 = vmatpush1.bf16.xpose.msra.mxu0 0
        %699 = vmatprep.mubr.bf16.mxu0 0
        %700 = vmatmul.mubr.bf16.gmra.mrb[0].mxu0 %v662
        %v701 = vpop.f32.mrb[0].mxu0
        %v702 = vadd.f32 %v509, %v701
        %v703 = vpop.f32.mrb[0].mxu0
        %v704 = vpop.f32.mrb[0].mxu0
        %v705 = vpop.f32.mrb[0].mxu0
        %706 = vdwg.mxu0
        %v707 = vsel %vm513, %v555, -inf
        %708 = vmax.xlane.f32.xlu0 %v707
        %v709 = vpop.xlane.xlu0 %708
        %v710 = vsel %vm513, %v604, -inf
        %711 = vmax.xlane.f32.xlu0 %v710
        %v712 = vpop.xlane.xlu0 %711
        %v713 = vsel %vm513, %v653, -inf
        %714 = vmax.xlane.f32.xlu0 %v713
        %v715 = vpop.xlane.xlu0 %714
        %v716 = vsel %vm513, %v702, -inf
        %717 = vmax.xlane.f32.xlu0 %v716
        %v718 = vpop.xlane.xlu0 %717
        %v719 = vsub.f32 %v555, %v709
        %v720 = vsub.f32 %v604, %v712
        %v721 = vsub.f32 %v653, %v715
        %v722 = vsub.f32 %v702, %v718
        %v723 = vmul.f32 %v719, 1.442695
        %v724 = vpow.pop %v723
        %v725 = vmul.f32 %v720, 1.442695
        %v726 = vpow.pop %v725
        %v727 = vmul.f32 %v721, 1.442695
        %v728 = vpow.pop %v727
        %v729 = vmul.f32 %v722, 1.442695
        %v730 = vpow.pop %v729
        %v731 = vsel %vm513, %v724, 0.0
        %732 = vadd.xlane.f32.xlu0 %v731
        %v733 = vpop.xlane.xlu0 %732
        %v734 = vsel %vm513, %v726, 0.0
        %735 = vadd.xlane.f32.xlu0 %v734
        %v736 = vpop.xlane.xlu0 %735
        %v737 = vsel %vm513, %v728, 0.0
        %738 = vadd.xlane.f32.xlu0 %v737
        %v739 = vpop.xlane.xlu0 %738
        %v740 = vsel %vm513, %v730, 0.0
        %741 = vadd.xlane.f32.xlu0 %v740
        %v742 = vpop.xlane.xlu0 %741
        %v743 = vrcp.pop %v733
        %v744 = vrcp.pop %v736
        %v745 = vrcp.pop %v739
        %v746 = vrcp.pop %v742
        %v747 = vmul.f32 %v724, %v743
        %v748 = vmul.f32 %v726, %v744
        %v749 = vmul.f32 %v728, %v745
        %v750 = vmul.f32 %v730, %v746
        %v751 = vpack.c.bf16 %v747, %v747
        %v752 = vpack.c.bf16 %v748, %v748
        %v753 = vpack.c.bf16 %v749, %v749
        %v754 = vpack.c.bf16 %v750, %v750
        %755 = vrot.lane.b32.xlu0 %v505, 112
        %v756 = vpop.permute.xlu0 %755
        %v758 = vsel %vm513, %v751, 0
        %vm760 = vcmask 1043456
        %v762 = vsel %vm760, %v756, 0
        %764 = vmatprep.subr.bf16.mxu0 0
        %765 = vmatpush1.bf16.msra.mxu0 %v762
        %766 = vmatprep.subr.bf16.mxu0 0
        %767 = vmatpush1.bf16.msra.mxu0 0
        %768 = vmatprep.subr.bf16.mxu0 0
        %769 = vmatpush1.bf16.msra.mxu0 0
        %770 = vmatprep.subr.bf16.mxu0 0
        %771 = vmatpush1.bf16.msra.mxu0 0
        %772 = vmatprep.subr.bf16.mxu0 0
        %773 = vmatpush1.bf16.msra.mxu0 0
        %774 = vmatprep.subr.bf16.mxu0 0
        %775 = vmatpush1.bf16.msra.mxu0 0
        %776 = vmatprep.subr.bf16.mxu0 0
        %777 = vmatpush1.bf16.msra.mxu0 0
        %778 = vmatprep.subr.bf16.mxu0 0
        %779 = vmatpush1.bf16.msra.mxu0 0
        %780 = vmatprep.subr.bf16.mxu0 0
        %781 = vmatpush1.bf16.msra.mxu0 0
        %782 = vmatprep.subr.bf16.mxu0 0
        %783 = vmatpush1.bf16.msra.mxu0 0
        %784 = vmatprep.subr.bf16.mxu0 0
        %785 = vmatpush1.bf16.msra.mxu0 0
        %786 = vmatprep.subr.bf16.mxu0 0
        %787 = vmatpush1.bf16.msra.mxu0 0
        %788 = vmatprep.subr.bf16.mxu0 0
        %789 = vmatpush1.bf16.msra.mxu0 0
        %790 = vmatprep.subr.bf16.mxu0 0
        %791 = vmatpush1.bf16.msra.mxu0 0
        %792 = vmatprep.subr.bf16.mxu0 0
        %793 = vmatpush1.bf16.msra.mxu0 0
        %794 = vmatprep.subr.bf16.mxu0 0
        %795 = vmatpush1.bf16.msra.mxu0 0
        %796 = vmatprep.mubr.bf16.mxu0 0
        %797 = vmatmul.mubr.bf16.gmra.mrb[0].mxu0 %v758
        %v798 = vpop.f32.mrb[0].mxu0
        %v799 = vadd.f32 0.0, %v798
        %v800 = vpop.f32.mrb[0].mxu0
        %v801 = vpop.f32.mrb[0].mxu0
        %v802 = vpop.f32.mrb[0].mxu0
        %803 = vdwg.mxu0
        %804 = vrot.lane.b32.xlu0 %v506, 112
        %v805 = vpop.permute.xlu0 %804
        %v807 = vsel %vm513, %v752, 0
        %v810 = vsel %vm760, %v805, 0
        %812 = vmatprep.subr.bf16.mxu0 0
        %813 = vmatpush1.bf16.msra.mxu0 %v810
        %814 = vmatprep.subr.bf16.mxu0 0
        %815 = vmatpush1.bf16.msra.mxu0 0
        %816 = vmatprep.subr.bf16.mxu0 0
        %817 = vmatpush1.bf16.msra.mxu0 0
        %818 = vmatprep.subr.bf16.mxu0 0
        %819 = vmatpush1.bf16.msra.mxu0 0
        %820 = vmatprep.subr.bf16.mxu0 0
        %821 = vmatpush1.bf16.msra.mxu0 0
        %822 = vmatprep.subr.bf16.mxu0 0
        %823 = vmatpush1.bf16.msra.mxu0 0
        %824 = vmatprep.subr.bf16.mxu0 0
        %825 = vmatpush1.bf16.msra.mxu0 0
        %826 = vmatprep.subr.bf16.mxu0 0
        %827 = vmatpush1.bf16.msra.mxu0 0
        %828 = vmatprep.subr.bf16.mxu0 0
        %829 = vmatpush1.bf16.msra.mxu0 0
        %830 = vmatprep.subr.bf16.mxu0 0
        %831 = vmatpush1.bf16.msra.mxu0 0
        %832 = vmatprep.subr.bf16.mxu0 0
        %833 = vmatpush1.bf16.msra.mxu0 0
        %834 = vmatprep.subr.bf16.mxu0 0
        %835 = vmatpush1.bf16.msra.mxu0 0
        %836 = vmatprep.subr.bf16.mxu0 0
        %837 = vmatpush1.bf16.msra.mxu0 0
        %838 = vmatprep.subr.bf16.mxu0 0
        %839 = vmatpush1.bf16.msra.mxu0 0
        %840 = vmatprep.subr.bf16.mxu0 0
        %841 = vmatpush1.bf16.msra.mxu0 0
        %842 = vmatprep.subr.bf16.mxu0 0
        %843 = vmatpush1.bf16.msra.mxu0 0
        %844 = vmatprep.mubr.bf16.mxu0 0
        %845 = vmatmul.mubr.bf16.gmra.mrb[0].mxu0 %v807
        %v846 = vpop.f32.mrb[0].mxu0
        %v847 = vadd.f32 0.0, %v846
        %v848 = vpop.f32.mrb[0].mxu0
        %v849 = vpop.f32.mrb[0].mxu0
        %v850 = vpop.f32.mrb[0].mxu0
        %851 = vdwg.mxu0
        %852 = vrot.lane.b32.xlu0 %v507, 112
        %v853 = vpop.permute.xlu0 %852
        %v855 = vsel %vm513, %v753, 0
        %v858 = vsel %vm760, %v853, 0
        %860 = vmatprep.subr.bf16.mxu0 0
        %861 = vmatpush1.bf16.msra.mxu0 %v858
        %862 = vmatprep.subr.bf16.mxu0 0
        %863 = vmatpush1.bf16.msra.mxu0 0
        %864 = vmatprep.subr.bf16.mxu0 0
        %865 = vmatpush1.bf16.msra.mxu0 0
        %866 = vmatprep.subr.bf16.mxu0 0
        %867 = vmatpush1.bf16.msra.mxu0 0
        %868 = vmatprep.subr.bf16.mxu0 0
        %869 = vmatpush1.bf16.msra.mxu0 0
        %870 = vmatprep.subr.bf16.mxu0 0
        %871 = vmatpush1.bf16.msra.mxu0 0
        %872 = vmatprep.subr.bf16.mxu0 0
        %873 = vmatpush1.bf16.msra.mxu0 0
        %874 = vmatprep.subr.bf16.mxu0 0
        %875 = vmatpush1.bf16.msra.mxu0 0
        %876 = vmatprep.subr.bf16.mxu0 0
        %877 = vmatpush1.bf16.msra.mxu0 0
        %878 = vmatprep.subr.bf16.mxu0 0
        %879 = vmatpush1.bf16.msra.mxu0 0
        %880 = vmatprep.subr.bf16.mxu0 0
        %881 = vmatpush1.bf16.msra.mxu0 0
        %882 = vmatprep.subr.bf16.mxu0 0
        %883 = vmatpush1.bf16.msra.mxu0 0
        %884 = vmatprep.subr.bf16.mxu0 0
        %885 = vmatpush1.bf16.msra.mxu0 0
        %886 = vmatprep.subr.bf16.mxu0 0
        %887 = vmatpush1.bf16.msra.mxu0 0
        %888 = vmatprep.subr.bf16.mxu0 0
        %889 = vmatpush1.bf16.msra.mxu0 0
        %890 = vmatprep.subr.bf16.mxu0 0
        %891 = vmatpush1.bf16.msra.mxu0 0
        %892 = vmatprep.mubr.bf16.mxu0 0
        %893 = vmatmul.mubr.bf16.gmra.mrb[0].mxu0 %v855
        %v894 = vpop.f32.mrb[0].mxu0
        %v895 = vadd.f32 0.0, %v894
        %v896 = vpop.f32.mrb[0].mxu0
        %v897 = vpop.f32.mrb[0].mxu0
        %v898 = vpop.f32.mrb[0].mxu0
        %899 = vdwg.mxu0
        %900 = vrot.lane.b32.xlu0 %v508, 112
        %v901 = vpop.permute.xlu0 %900
        %v903 = vsel %vm513, %v754, 0
        %v906 = vsel %vm760, %v901, 0
        %908 = vmatprep.subr.bf16.mxu0 0
        %909 = vmatpush1.bf16.msra.mxu0 %v906
        %910 = vmatprep.subr.bf16.mxu0 0
        %911 = vmatpush1.bf16.msra.mxu0 0
        %912 = vmatprep.subr.bf16.mxu0 0
        %913 = vmatpush1.bf16.msra.mxu0 0
        %914 = vmatprep.subr.bf16.mxu0 0
        %915 = vmatpush1.bf16.msra.mxu0 0
        %916 = vmatprep.subr.bf16.mxu0 0
        %917 = vmatpush1.bf16.msra.mxu0 0
        %918 = vmatprep.subr.bf16.mxu0 0
        %919 = vmatpush1.bf16.msra.mxu0 0
        %920 = vmatprep.subr.bf16.mxu0 0
        %921 = vmatpush1.bf16.msra.mxu0 0
        %922 = vmatprep.subr.bf16.mxu0 0
        %923 = vmatpush1.bf16.msra.mxu0 0
        %924 = vmatprep.subr.bf16.mxu0 0
        %925 = vmatpush1.bf16.msra.mxu0 0
        %926 = vmatprep.subr.bf16.mxu0 0
        %927 = vmatpush1.bf16.msra.mxu0 0
        %928 = vmatprep.subr.bf16.mxu0 0
        %929 = vmatpush1.bf16.msra.mxu0 0
        %930 = vmatprep.subr.bf16.mxu0 0
        %931 = vmatpush1.bf16.msra.mxu0 0
        %932 = vmatprep.subr.bf16.mxu0 0
        %933 = vmatpush1.bf16.msra.mxu0 0
        %934 = vmatprep.subr.bf16.mxu0 0
        %935 = vmatpush1.bf16.msra.mxu0 0
        %936 = vmatprep.subr.bf16.mxu0 0
        %937 = vmatpush1.bf16.msra.mxu0 0
        %938 = vmatprep.subr.bf16.mxu0 0
        %939 = vmatpush1.bf16.msra.mxu0 0
        %940 = vmatprep.mubr.bf16.mxu0 0
        %941 = vmatmul.mubr.bf16.gmra.mrb[0].mxu0 %v903
        %v942 = vpop.f32.mrb[0].mxu0
        %v943 = vadd.f32 0.0, %v942
        %v944 = vpop.f32.mrb[0].mxu0
        %v945 = vpop.f32.mrb[0].mxu0
        %v946 = vpop.f32.mrb[0].mxu0
        %947 = vdwg.mxu0
        %v948 = vpack.c.bf16 %v799, %v799
        %v949 = vpack.c.bf16 %v847, %v847
        %v950 = vpack.c.bf16 %v895, %v895
        %v951 = vpack.c.bf16 %v943, %v943
        %v952 = vld [vmem:[%s3] sm:$0xf]
        %v953 = vld [vmem:[%s3 + $0x4] sm:$0xf]
        %v954 = vld [vmem:[%s3 + $0x8] sm:$0xf]
        %v955 = vld [vmem:[%s3 + $0xc] sm:$0xf]
        %v957 = vsel %vm513, %v948, 0
        %v960 = vsel %vm760, %v952, 0
        %962 = vmatprep.subr.bf16.mxu0 0
        %963 = vmatpush1.bf16.msra.mxu0 %v960
        %964 = vmatprep.subr.bf16.mxu0 0
        %965 = vmatpush1.bf16.msra.mxu0 0
        %966 = vmatprep.subr.bf16.mxu0 0
        %967 = vmatpush1.bf16.msra.mxu0 0
        %968 = vmatprep.subr.bf16.mxu0 0
        %969 = vmatpush1.bf16.msra.mxu0 0
        %970 = vmatprep.subr.bf16.mxu0 0
        %971 = vmatpush1.bf16.msra.mxu0 0
        %972 = vmatprep.subr.bf16.mxu0 0
        %973 = vmatpush1.bf16.msra.mxu0 0
        %974 = vmatprep.subr.bf16.mxu0 0
        %975 = vmatpush1.bf16.msra.mxu0 0
        %976 = vmatprep.subr.bf16.mxu0 0
        %977 = vmatpush1.bf16.msra.mxu0 0
        %978 = vmatprep.subr.bf16.mxu0 0
        %979 = vmatpush1.bf16.msra.mxu0 0
        %980 = vmatprep.subr.bf16.mxu0 0
        %981 = vmatpush1.bf16.msra.mxu0 0
        %982 = vmatprep.subr.bf16.mxu0 0
        %983 = vmatpush1.bf16.msra.mxu0 0
        %984 = vmatprep.subr.bf16.mxu0 0
        %985 = vmatpush1.bf16.msra.mxu0 0
        %986 = vmatprep.subr.bf16.mxu0 0
        %987 = vmatpush1.bf16.msra.mxu0 0
        %988 = vmatprep.subr.bf16.mxu0 0
        %989 = vmatpush1.bf16.msra.mxu0 0
        %990 = vmatprep.subr.bf16.mxu0 0
        %991 = vmatpush1.bf16.msra.mxu0 0
        %992 = vmatprep.subr.bf16.mxu0 0
        %993 = vmatpush1.bf16.msra.mxu0 0
        %994 = vmatprep.mubr.bf16.mxu0 0
        %995 = vmatmul.mubr.bf16.gmra.mrb[0].mxu0 %v957
        %v996 = vpop.f32.mrb[0].mxu0
        %v997 = vadd.f32 0.0, %v996
        %v998 = vpop.f32.mrb[0].mxu0
        %v999 = vpop.f32.mrb[0].mxu0
        %v1000 = vpop.f32.mrb[0].mxu0
        %1001 = vdwg.mxu0
        %v1003 = vsel %vm513, %v949, 0
        %v1006 = vsel %vm760, %v953, 0
        %1008 = vmatprep.subr.bf16.mxu0 0
        %1009 = vmatpush1.bf16.msra.mxu0 %v1006
        %1010 = vmatprep.subr.bf16.mxu0 0
        %1011 = vmatpush1.bf16.msra.mxu0 0
        %1012 = vmatprep.subr.bf16.mxu0 0
        %1013 = vmatpush1.bf16.msra.mxu0 0
        %1014 = vmatprep.subr.bf16.mxu0 0
        %1015 = vmatpush1.bf16.msra.mxu0 0
        %1016 = vmatprep.subr.bf16.mxu0 0
        %1017 = vmatpush1.bf16.msra.mxu0 0
        %1018 = vmatprep.subr.bf16.mxu0 0
        %1019 = vmatpush1.bf16.msra.mxu0 0
        %1020 = vmatprep.subr.bf16.mxu0 0
        %1021 = vmatpush1.bf16.msra.mxu0 0
        %1022 = vmatprep.subr.bf16.mxu0 0
        %1023 = vmatpush1.bf16.msra.mxu0 0
        %1024 = vmatprep.subr.bf16.mxu0 0
        %1025 = vmatpush1.bf16.msra.mxu0 0
        %1026 = vmatprep.subr.bf16.mxu0 0
        %1027 = vmatpush1.bf16.msra.mxu0 0
        %1028 = vmatprep.subr.bf16.mxu0 0
        %1029 = vmatpush1.bf16.msra.mxu0 0
        %1030 = vmatprep.subr.bf16.mxu0 0
        %1031 = vmatpush1.bf16.msra.mxu0 0
        %1032 = vmatprep.subr.bf16.mxu0 0
        %1033 = vmatpush1.bf16.msra.mxu0 0
        %1034 = vmatprep.subr.bf16.mxu0 0
        %1035 = vmatpush1.bf16.msra.mxu0 0
        %1036 = vmatprep.subr.bf16.mxu0 0
        %1037 = vmatpush1.bf16.msra.mxu0 0
        %1038 = vmatprep.subr.bf16.mxu0 0
        %1039 = vmatpush1.bf16.msra.mxu0 0
        %1040 = vmatprep.mubr.bf16.mxu0 0
        %1041 = vmatmul.mubr.bf16.gmra.mrb[0].mxu0 %v1003
        %v1042 = vpop.f32.mrb[0].mxu0
        %v1043 = vadd.f32 0.0, %v1042
        %v1044 = vpop.f32.mrb[0].mxu0
        %v1045 = vpop.f32.mrb[0].mxu0
        %v1046 = vpop.f32.mrb[0].mxu0
        %1047 = vdwg.mxu0
        %v1049 = vsel %vm513, %v950, 0
        %v1052 = vsel %vm760, %v954, 0
        %1054 = vmatprep.subr.bf16.mxu0 0
        %1055 = vmatpush1.bf16.msra.mxu0 %v1052
        %1056 = vmatprep.subr.bf16.mxu0 0
        %1057 = vmatpush1.bf16.msra.mxu0 0
        %1058 = vmatprep.subr.bf16.mxu0 0
        %1059 = vmatpush1.bf16.msra.mxu0 0
        %1060 = vmatprep.subr.bf16.mxu0 0
        %1061 = vmatpush1.bf16.msra.mxu0 0
        %1062 = vmatprep.subr.bf16.mxu0 0
        %1063 = vmatpush1.bf16.msra.mxu0 0
        %1064 = vmatprep.subr.bf16.mxu0 0
        %1065 = vmatpush1.bf16.msra.mxu0 0
        %1066 = vmatprep.subr.bf16.mxu0 0
        %1067 = vmatpush1.bf16.msra.mxu0 0
        %1068 = vmatprep.subr.bf16.mxu0 0
        %1069 = vmatpush1.bf16.msra.mxu0 0
        %1070 = vmatprep.subr.bf16.mxu0 0
        %1071 = vmatpush1.bf16.msra.mxu0 0
        %1072 = vmatprep.subr.bf16.mxu0 0
        %1073 = vmatpush1.bf16.msra.mxu0 0
        %1074 = vmatprep.subr.bf16.mxu0 0
        %1075 = vmatpush1.bf16.msra.mxu0 0
        %1076 = vmatprep.subr.bf16.mxu0 0
        %1077 = vmatpush1.bf16.msra.mxu0 0
        %1078 = vmatprep.subr.bf16.mxu0 0
        %1079 = vmatpush1.bf16.msra.mxu0 0
        %1080 = vmatprep.subr.bf16.mxu0 0
        %1081 = vmatpush1.bf16.msra.mxu0 0
        %1082 = vmatprep.subr.bf16.mxu0 0
        %1083 = vmatpush1.bf16.msra.mxu0 0
        %1084 = vmatprep.subr.bf16.mxu0 0
        %1085 = vmatpush1.bf16.msra.mxu0 0
        %1086 = vmatprep.mubr.bf16.mxu0 0
        %1087 = vmatmul.mubr.bf16.gmra.mrb[0].mxu0 %v1049
        %v1088 = vpop.f32.mrb[0].mxu0
        %v1089 = vadd.f32 0.0, %v1088
        %v1090 = vpop.f32.mrb[0].mxu0
        %v1091 = vpop.f32.mrb[0].mxu0
        %v1092 = vpop.f32.mrb[0].mxu0
        %1093 = vdwg.mxu0
        %v1095 = vsel %vm513, %v951, 0
        %v1098 = vsel %vm760, %v955, 0
        %1100 = vmatprep.subr.bf16.mxu0 0
        %1101 = vmatpush1.bf16.msra.mxu0 %v1098
        %1102 = vmatprep.subr.bf16.mxu0 0
        %1103 = vmatpush1.bf16.msra.mxu0 0
        %1104 = vmatprep.subr.bf16.mxu0 0
        %1105 = vmatpush1.bf16.msra.mxu0 0
        %1106 = vmatprep.subr.bf16.mxu0 0
        %1107 = vmatpush1.bf16.msra.mxu0 0
        %1108 = vmatprep.subr.bf16.mxu0 0
        %1109 = vmatpush1.bf16.msra.mxu0 0
        %1110 = vmatprep.subr.bf16.mxu0 0
        %1111 = vmatpush1.bf16.msra.mxu0 0
        %1112 = vmatprep.subr.bf16.mxu0 0
        %1113 = vmatpush1.bf16.msra.mxu0 0
        %1114 = vmatprep.subr.bf16.mxu0 0
        %1115 = vmatpush1.bf16.msra.mxu0 0
        %1116 = vmatprep.subr.bf16.mxu0 0
        %1117 = vmatpush1.bf16.msra.mxu0 0
        %1118 = vmatprep.subr.bf16.mxu0 0
        %1119 = vmatpush1.bf16.msra.mxu0 0
        %1120 = vmatprep.subr.bf16.mxu0 0
        %1121 = vmatpush1.bf16.msra.mxu0 0
        %1122 = vmatprep.subr.bf16.mxu0 0
        %1123 = vmatpush1.bf16.msra.mxu0 0
        %1124 = vmatprep.subr.bf16.mxu0 0
        %1125 = vmatpush1.bf16.msra.mxu0 0
        %1126 = vmatprep.subr.bf16.mxu0 0
        %1127 = vmatpush1.bf16.msra.mxu0 0
        %1128 = vmatprep.subr.bf16.mxu0 0
        %1129 = vmatpush1.bf16.msra.mxu0 0
        %1130 = vmatprep.subr.bf16.mxu0 0
        %1131 = vmatpush1.bf16.msra.mxu0 0
        %1132 = vmatprep.mubr.bf16.mxu0 0
        %1133 = vmatmul.mubr.bf16.gmra.mrb[0].mxu0 %v1095
        %v1134 = vpop.f32.mrb[0].mxu0
        %v1135 = vadd.f32 0.0, %v1134
        %v1136 = vpop.f32.mrb[0].mxu0
        %v1137 = vpop.f32.mrb[0].mxu0
        %v1138 = vpop.f32.mrb[0].mxu0
        %1139 = vdwg.mxu0
        %v1140 = vsel %vm305, %v997, 0.0
        %v1141 = vsel %vm305, %v1043, 0.0
        %v1142 = vadd.f32 %v1140, %v1141
        %v1143 = vsel %vm305, %v1089, 0.0
        %v1144 = vadd.f32 %v1142, %v1143
        %v1145 = vsel %vm305, %v1135, 0.0
        %v1146 = vadd.f32 %v1144, %v1145
        %v1147 = vld [vmem:[%s4] sm:$0x1]
        %v1149 = vlaneseq
        %v1150 = vshrl.u32 %v1149, 7
        %v1151 = vsub.s32 0, %v1150
        %v1152 = vrot.slane %v1147, %v1151
        %v1154 = vadd.f32 %v1146, %v1152
        %1155 = vst.msk [vmem:[%s242] sm:$0xff] %vm305, %v1154
        %s1156 = sand.u32 %s159, 1
        %s1157 = scalar_lea.sflag [#allocation3], %s1156
        %s1158 = sand.u32 %s159, 1
        %s1159 = smul.addr %s1158, 8
        %s1160 = scalar_lea.vmem [#allocation2], %s1159
        // Predicated region
        $region45: #{causal_self_attention.1} parent=43 // pred_check
          %p1161 = pneg %p169
        $region46: #{causal_self_attention.1} parent=43 // pred_check_branch
          %1163 = sbr.rel (%p1161) target = $region48
        $region47: #{causal_self_attention.1} parent=43 // pred_region
          %s1165 = ssub.s32 128, 128
          %1166 = vsyncadd %s1157, %s1165
          %s1167 = smul.addr %s20, 128
          %s1168 = scalar_lea.hbm %s6, %s1167
          %s1170 = sshll.u32 %s1160, 4
          %s1171 = int_to_ptr.vmem [resolvable:$true] %s1170
          %1173 = dma.vmem_to_hbm [thread:$0]  %s1171, 128, %s1168, %s1157
        $region48: #{causal_self_attention.1} parent=43 // pred_fallthru
          _
      $region44: #{causal_self_attention.1} parent=5 // pred_fallthru
        _
      %p1174 = scmp.le.s32.totalorder 2, %s15
      // Predicated region
      $region49: #{causal_self_attention.1} parent=5 // pred_check
        %p1175 = pneg %p1174
      $region50: #{causal_self_attention.1} parent=5 // pred_check_branch
        %1177 = sbr.rel (%p1175) target = $region52
      $region51: #{causal_self_attention.1} parent=5 // pred_region
        %s1178 = ssub.s32 %s15, 2
        // Predicated region
        $region53: #{causal_self_attention.1} parent=51 // pred_check
          %p1179 = pneg %p175
        $region54: #{causal_self_attention.1} parent=51 // pred_check_branch
          %1181 = sbr.rel (%p1179) target = $region56
        $region55: #{causal_self_attention.1} parent=51 // pred_region
          %s1182 = sand.u32 %s160, 1
          %s1183 = scalar_lea.sflag [#allocation3], %s1182
          %s1184 = sand.u32 %s160, 1
          %s1185 = smul.addr %s1184, 8
          %s1186 = scalar_lea.vmem [#allocation2], %s1185
          %1187 = dma.done %s1183, 128
        $region56: #{causal_self_attention.1} parent=51 // pred_fallthru
          _
      $region52: #{causal_self_attention.1} parent=5 // pred_fallthru
        _
    $region6: #{causal_self_attention.1} parent=1 // loop_footer
      %s19 = sadd.s32 1, %s15
    $region7: #{causal_self_attention.1} parent=1 // loop_footer_branch
      %14 = sbr.rel target = $region3
    $region8: #{causal_self_attention.1} parent=1 // loop_exit
      _
    %1188 = vsyncpa [#allocation3], 1
    %s1189 = scalar_lea.sflag [#allocation3], 1
    %1190 = vsyncpa %s1189, 1

</llo_original>
